<compile_context>
chip_gen: v5e
topology: v5e:2x2
jax: 0.10.0
libtpu: 0.0.40
codegen_flags: <defaults>
</compile_context>

<pallas_src>
import functools

import jax
import jax.numpy as jnp
from jax.experimental import pallas as pl
from jax.experimental.pallas import tpu as pltpu


# Budget for the double-buffered input + output blocks (plus an f32 pooling
# temp).  Kept well inside the scoped limit requested below so pipelining
# never degrades on v7x (64 MiB physical) or v5e (small default scope).
_VMEM_BLOCK_BUDGET = 20 * 1024 * 1024
_VMEM_LIMIT_BYTES = 48 * 1024 * 1024


def _se_kernel(x_ref, w1_ref, b1_ref, w2_ref, b2_ref, o_ref, *, channels_last):
    """One grid step: NB batch items at full channel/spatial extent.

    x block layout:
      channels_last=False: (NB, C, L)  -- spatial on lanes (early SE stages)
      channels_last=True : (NB, L, C)  -- channels on lanes (late SE stages)
    w1_ref: (C, Cr) already scaled by bn1_scale / L.
    w2_ref: (Cr, C) already scaled by bn2_scale.
    """
    x = x_ref[...]

    # Squeeze: spatial sum in f32 (the 1/L mean factor is folded into w1).
    if channels_last:
        pooled = jnp.sum(x.astype(jnp.float32), axis=1)      # (NB, C) sublane reduce
    else:
        pooled = jnp.sum(x.astype(jnp.float32), axis=2)      # (NB, C) lane reduce

    # Excite: two 1x1 convs == two small MXU matmuls (BN folded into w/b).
    h = jnp.dot(pooled, w1_ref[...], preferred_element_type=jnp.float32)
    h = jnp.maximum(h + b1_ref[...], 0.0)                    # (NB, Cr)
    z = jnp.dot(h, w2_ref[...], preferred_element_type=jnp.float32)
    z = z + b2_ref[...]                                      # (NB, C)

    # hsigmoid gate; cast to the activation dtype before the broadcast so no
    # full-size f32 copy of the block stays live across the multiply.
    gate = (jnp.clip(z + 3.0, 0.0, 6.0) * (1.0 / 6.0)).astype(x.dtype)

    if channels_last:
        o_ref[...] = (x * gate[:, None, :]).astype(o_ref.dtype)
    else:
        o_ref[...] = (x * gate[:, :, None]).astype(o_ref.dtype)


def _choose_batch_block(N, C, L, itemsize):
    """Pick NB so 2x(in)+2x(out) blocks plus an f32 temp fit the VMEM budget,
    while keeping the grid length >= 2 (megacore / v7x two-TC sharding)."""
    per_item = 4 * C * L * itemsize + C * L * 4
    nb = max(1, _VMEM_BLOCK_BUDGET // per_item)
    if N >= 2:
        nb = min(nb, (N + 1) // 2)
    nb = min(nb, N)
    while N % nb:            # even division -> no partial blocks
        nb -= 1
    return int(nb)


def se_module(x_nchw, w1, w2, bn1, bn2, eps=1e-5):
    """x_nchw: (N, C, H, W). w1: (Cr, C), w2: (C, Cr) -- PyTorch 1x1 conv
    weights with the trailing (1, 1) kernel dims squeezed. bn{1,2}: dicts with
    gamma/beta/mean/var (eval-mode BatchNorm)."""
    N, C, H, W = x_nchw.shape
    Cr = w1.shape[0]
    L = H * W
    itemsize = jnp.dtype(x_nchw.dtype).itemsize

    # Fold eval-mode BN into per-channel scale/bias, then fold the scales and
    # the 1/L mean factor into the matmul weights (kernel only sees biases).
    s1 = bn1["gamma"] / jnp.sqrt(bn1["var"] + eps)
    b1 = bn1["beta"] - bn1["mean"] * s1
    s2 = bn2["gamma"] / jnp.sqrt(bn2["var"] + eps)
    b2 = bn2["beta"] - bn2["mean"] * s2

    w1f = w1.T.astype(jnp.float32) * (s1 / L)[None, :]        # (C, Cr)
    w2f = w2.T.astype(jnp.float32) * s2[None, :]              # (Cr, C)
    b1 = b1.reshape(1, Cr).astype(jnp.float32)
    b2 = b2.reshape(1, C).astype(jnp.float32)

    # Lane-dense layout per shape: put the larger extent on the lane axis.
    # (In a full network this transpose would be propagated through adjacent
    # layers rather than paid per SE block.)
    channels_last = (L < 128) and (C > L)
    x = x_nchw.reshape(N, C, L)
    if channels_last:
        x = jnp.swapaxes(x, 1, 2)                             # (N, L, C)
    A, B = x.shape[1], x.shape[2]

    # NOTE: last two dims are carried at full extent; for very large C*L the
    # block budget may force NB=1 (still correct, just less amortization).
    NB = _choose_batch_block(N, C, L, itemsize)
    grid = (N // NB,)

    full = lambda shape: pl.BlockSpec(shape, lambda n: (0,) * len(shape))

    # Memory-bound hint for XLA's scheduler.
    cost = pl.CostEstimate(
        flops=int(N * (2 * C * L + 4 * C * Cr + 8 * C)),
        transcendentals=0,
        bytes_accessed=int(2 * N * C * L * itemsize + 4 * (2 * C * Cr + C + Cr)),
    )

    out = pl.pallas_call(
        functools.partial(_se_kernel, channels_last=channels_last),
        out_shape=jax.ShapeDtypeStruct((N, A, B), x.dtype),
        grid_spec=pltpu.PrefetchScalarGridSpec(
            num_scalar_prefetch=0,
            grid=grid,
            in_specs=[
                pl.BlockSpec((NB, A, B), lambda n: (n, 0, 0)),  # x
                full((C, Cr)),                                  # w1 (BN/L folded)
                full((1, Cr)),                                  # bn1 bias
                full((Cr, C)),                                  # w2 (BN folded)
                full((1, C)),                                   # bn2 bias
            ],
            out_specs=pl.BlockSpec((NB, A, B), lambda n: (n, 0, 0)),
        ),
        compiler_params=pltpu.CompilerParams(
            dimension_semantics=("parallel",),
            vmem_limit_bytes=_VMEM_LIMIT_BYTES),
        cost_estimate=cost,
    )(x, w1f, b1, w2f, b2)

    if channels_last:
        out = jnp.swapaxes(out, 1, 2)
    return out.reshape(N, C, H, W)


def se_module_ref(x, w1, w2, bn1, bn2, eps=1e-5):
    """Pure-JAX reference mirroring the PyTorch forward (eval-mode BN)."""
    pooled = jnp.mean(x, axis=(2, 3))                         # (N, C)
    h = pooled @ w1.T                                         # (N, Cr)
    h = (h - bn1["mean"]) / jnp.sqrt(bn1["var"] + eps) * bn1["gamma"] + bn1["beta"]
    h = jnp.maximum(h, 0.0)
    z = h @ w2.T                                              # (N, C)
    z = (z - bn2["mean"]) / jnp.sqrt(bn2["var"] + eps) * bn2["gamma"] + bn2["beta"]
    gate = jnp.clip(z + 3.0, 0.0, 6.0) / 6.0
    return x * gate[:, :, None, None]


def _make_params(key, C, Cr):
    k_w1, k_w2, k_b1, k_b2, k_m1, k_m2 = jax.random.split(key, 6)
    w1 = jax.random.normal(k_w1, (Cr, C), dtype=jnp.float32) * 0.1  # (Cr,C,1,1) squeezed
    w2 = jax.random.normal(k_w2, (C, Cr), dtype=jnp.float32) * 0.1  # (C,Cr,1,1) squeezed
    bn1 = dict(
        gamma=1.0 + 0.1 * jnp.arange(Cr, dtype=jnp.float32),
        beta=0.05 * jax.random.normal(k_b1, (Cr,), dtype=jnp.float32),
        mean=0.02 * jax.random.normal(k_m1, (Cr,), dtype=jnp.float32),
        var=jnp.abs(1.0 + 0.05 * jnp.arange(Cr, dtype=jnp.float32)),
    )
    bn2 = dict(
        gamma=1.0 + 0.05 * jnp.arange(C, dtype=jnp.float32),
        beta=0.05 * jax.random.normal(k_b2, (C,), dtype=jnp.float32),
        mean=0.02 * jax.random.normal(k_m2, (C,), dtype=jnp.float32),
        var=jnp.abs(1.0 + 0.03 * jnp.arange(C, dtype=jnp.float32)),
    )
    return w1, w2, bn1, bn2


if __name__ == "__main__":
    key = jax.random.PRNGKey(0)

    # Case 1: early-stage shape (L = 256 >= 128) -> spatial-on-lanes layout.
    # Case 2: late-stage-style shape (C > L, L < 128) -> channels-on-lanes.
    cases = [
        ((2, 8, 16, 16), 4),
        ((3, 32, 4, 4), 4),
    ]

    for idx, ((N, C, H, W), reduction) in enumerate(cases):
        k_x, k_p, key = jax.random.split(key, 3)
        Cr = C // reduction
        x = jax.random.normal(k_x, (N, C, H, W), dtype=jnp.float32)
        w1, w2, bn1, bn2 = _make_params(k_p, C, Cr)

        out = jax.block_until_ready(se_module(x, w1, w2, bn1, bn2))
        ref = se_module_ref(x, w1, w2, bn1, bn2)

        assert out.shape == (N, C, H, W)
        assert jnp.allclose(out, ref, atol=1e-5, rtol=1e-5), f"case {idx} mismatch"

    print("KERNEL_OK")
</pallas_src>

<mosaic_0001>
module attributes {stable_mosaic.version = 11 : i64} {
  func.func @_se_kernel(%arg0: i32, %arg1: memref<1x8x256xf32, #tpu.memory_space<vmem>>, %arg2: memref<8x2xf32, #tpu.memory_space<vmem>>, %arg3: memref<1x2xf32, #tpu.memory_space<vmem>>, %arg4: memref<2x8xf32, #tpu.memory_space<vmem>>, %arg5: memref<1x8xf32, #tpu.memory_space<vmem>>, %arg6: memref<1x8x256xf32, #tpu.memory_space<vmem>>) attributes {dimension_semantics = [#tpu.dimension_semantics<parallel>], iteration_bounds = array<i64: 2>, scalar_prefetch = 0 : i64, scratch_operands = 0 : i64, tpu.core_type = #tpu.core_type<tc>, window_params = [{transform_indices = @transform_0, window_bounds = array<i64: 1, 8, 256>}, {pipeline_mode = #tpu.pipeline_mode<synchronous>, transform_indices = @transform_1, window_bounds = array<i64: 8, 2>}, {pipeline_mode = #tpu.pipeline_mode<synchronous>, transform_indices = @transform_2, window_bounds = array<i64: 1, 2>}, {pipeline_mode = #tpu.pipeline_mode<synchronous>, transform_indices = @transform_3, window_bounds = array<i64: 2, 8>}, {pipeline_mode = #tpu.pipeline_mode<synchronous>, transform_indices = @transform_4, window_bounds = array<i64: 1, 8>}, {transform_indices = @transform_5, window_bounds = array<i64: 1, 8, 256>}]} {
    %c0 = arith.constant 0 : index
    %c0_0 = arith.constant 0 : index
    %c0_1 = arith.constant 0 : index
    %0 = vector.load %arg1[%c0, %c0_0, %c0_1] : memref<1x8x256xf32, #tpu.memory_space<vmem>>, vector<1x8x256xf32>
    %cst = arith.constant dense<0.000000e+00> : vector<1x8xf32>
    %1 = vector.multi_reduction <add>, %0, %cst [2] : vector<1x8x256xf32> to vector<1x8xf32>
    %c0_2 = arith.constant 0 : index
    %c0_3 = arith.constant 0 : index
    %2 = vector.load %arg2[%c0_2, %c0_3] : memref<8x2xf32, #tpu.memory_space<vmem>>, vector<8x2xf32>
    %cst_4 = arith.constant dense<0.000000e+00> : vector<1x2xf32>
    %3 = tpu.matmul %1, %2, %cst_4 {dimension_numbers = #tpu.dot_dimension_numbers<[1], [0], [0], [1], [0, 0, 1, 1], [], []>} : vector<1x8xf32>, vector<8x2xf32>, vector<1x2xf32> -> vector<1x2xf32>
    %c0_5 = arith.constant 0 : index
    %c0_6 = arith.constant 0 : index
    %4 = vector.load %arg3[%c0_5, %c0_6] : memref<1x2xf32, #tpu.memory_space<vmem>>, vector<1x2xf32>
    %5 = arith.addf %3, %4 : vector<1x2xf32>
    %cst_7 = arith.constant 0.000000e+00 : f32
    %6 = vector.broadcast %cst_7 : f32 to vector<1x2xf32>
    %7 = arith.maximumf %5, %6 : vector<1x2xf32>
    %c0_8 = arith.constant 0 : index
    %c0_9 = arith.constant 0 : index
    %8 = vector.load %arg4[%c0_8, %c0_9] : memref<2x8xf32, #tpu.memory_space<vmem>>, vector<2x8xf32>
    %cst_10 = arith.constant dense<0.000000e+00> : vector<1x8xf32>
    %9 = tpu.matmul %7, %8, %cst_10 {dimension_numbers = #tpu.dot_dimension_numbers<[1], [0], [0], [1], [0, 0, 1, 1], [], []>} : vector<1x2xf32>, vector<2x8xf32>, vector<1x8xf32> -> vector<1x8xf32>
    %c0_11 = arith.constant 0 : index
    %c0_12 = arith.constant 0 : index
    %10 = vector.load %arg5[%c0_11, %c0_12] : memref<1x8xf32, #tpu.memory_space<vmem>>, vector<1x8xf32>
    %11 = arith.addf %9, %10 : vector<1x8xf32>
    %cst_13 = arith.constant 3.000000e+00 : f32
    %12 = vector.broadcast %cst_13 : f32 to vector<1x8xf32>
    %13 = arith.addf %11, %12 : vector<1x8xf32>
    %cst_14 = arith.constant 0.000000e+00 : f32
    %cst_15 = arith.constant 6.000000e+00 : f32
    %14 = vector.broadcast %cst_14 : f32 to vector<1x8xf32>
    %15 = arith.maximumf %14, %13 : vector<1x8xf32>
    %16 = vector.broadcast %cst_15 : f32 to vector<1x8xf32>
    %17 = arith.minimumf %16, %15 : vector<1x8xf32>
    %cst_16 = arith.constant 0.166666672 : f32
    %18 = vector.broadcast %cst_16 : f32 to vector<1x8xf32>
    %19 = arith.mulf %17, %18 : vector<1x8xf32>
    %20 = vector.shape_cast %19 : vector<1x8xf32> to vector<1x8x1xf32>
    %21 = vector.broadcast %20 : vector<1x8x1xf32> to vector<1x8x256xf32>
    %22 = arith.mulf %0, %21 : vector<1x8x256xf32>
    %c0_17 = arith.constant 0 : index
    %c0_18 = arith.constant 0 : index
    %c0_19 = arith.constant 0 : index
    %23 = vector.load %arg6[%c0_17, %c0_18, %c0_19] : memref<1x8x256xf32, #tpu.memory_space<vmem>>, vector<1x8x256xf32>
    tpu.vector_store %arg6[%c0_17, %c0_18, %c0_19], %22 {strides = array<i32>} : memref<1x8x256xf32, #tpu.memory_space<vmem>>, vector<1x8x256xf32>,
    return
  }
  func.func @transform_0(%arg0: i32) -> (i32, i32, i32) {
    %c0_i32 = arith.constant 0 : i32
    %c0_i32_0 = arith.constant 0 : i32
    %c0_i32_1 = arith.constant 0 : i32
    return %arg0, %c0_i32, %c0_i32_0 : i32, i32, i32
  }
  func.func @transform_1(%arg0: i32) -> (i32, i32) {
    %c0_i32 = arith.constant 0 : i32
    %c0_i32_0 = arith.constant 0 : i32
    %c0_i32_1 = arith.constant 0 : i32
    return %c0_i32, %c0_i32_0 : i32, i32
  }
  func.func @transform_2(%arg0: i32) -> (i32, i32) {
    %c0_i32 = arith.constant 0 : i32
    %c0_i32_0 = arith.constant 0 : i32
    %c0_i32_1 = arith.constant 0 : i32
    return %c0_i32, %c0_i32_0 : i32, i32
  }
  func.func @transform_3(%arg0: i32) -> (i32, i32) {
    %c0_i32 = arith.constant 0 : i32
    %c0_i32_0 = arith.constant 0 : i32
    %c0_i32_1 = arith.constant 0 : i32
    return %c0_i32, %c0_i32_0 : i32, i32
  }
  func.func @transform_4(%arg0: i32) -> (i32, i32) {
    %c0_i32 = arith.constant 0 : i32
    %c0_i32_0 = arith.constant 0 : i32
    %c0_i32_1 = arith.constant 0 : i32
    return %c0_i32, %c0_i32_0 : i32, i32
  }
  func.func @transform_5(%arg0: i32) -> (i32, i32, i32) {
    %c0_i32 = arith.constant 0 : i32
    %c0_i32_0 = arith.constant 0 : i32
    %c0_i32_1 = arith.constant 0 : i32
    return %arg0, %c0_i32, %c0_i32_0 : i32, i32, i32
  }
}

</mosaic_0001>

<llo_original>
// kernel: tpu_custom_call.1
$region0: #{tpu_custom_call.1}
  #allocation0 [shape = 'u32[]', space=smem, size = 0x4, offset = 0x4, fixed_abs, tag = 'smem constant byte address 0x4 - core index']
  #allocation1 [shape = 'u32[72,128]{1,0:T(1,128)}', space=vmem, size = 0x9000, scoped, tag = 'internal scratch']
  %s0 = inlined_call_operand.hbm [shape: f32[2,8,256], index: 0, kind: input, shape index: {}]
  %s1 = inlined_call_operand.vmem [shape: f32[8,2], index: 1, kind: input, shape index: {}]
  %s2 = inlined_call_operand.vmem [shape: f32[1,2], index: 2, kind: input, shape index: {}]
  %s3 = inlined_call_operand.vmem [shape: f32[2,8], index: 3, kind: input, shape index: {}]
  %s4 = inlined_call_operand.vmem [shape: f32[1,8], index: 4, kind: input, shape index: {}]
  %s5 = inlined_call_operand.hbm [shape: f32[2,8,256], index: 5, kind: output, shape index: {}]
  %s6 = sld [smem:[#allocation0]]
  $region57: #{tpu_custom_call.1} parent=0
    _
  %s8 = ssub.s32 1, %s6
  %s9 = scalar_select 0, %s8, %s6
  $region1: #{tpu_custom_call.1} parent=0
    #allocation2 [shape = 'u8[16384]{0}', space=vmem, size = 0x4000, scoped, tag = 'input window, operand 0']
    #allocation3 [shape = 's32[2]{0}', space=sflag, size = 0x8, scoped, tag = 'scoped memory for tpu_custom_call.1']
    #allocation4 [shape = 's32[2]{0}', space=sflag, size = 0x8, scoped, tag = 'scoped memory for tpu_custom_call.1']
    #allocation5 [shape = 'u8[16384]{0}', space=vmem, size = 0x4000, scoped, tag = 'output window, operand 0']
    %10 = vsyncpa [#allocation3], 0
    %s11 = scalar_lea.sflag [#allocation3], 1
    %12 = vsyncpa %s11, 0
    %13 = vsyncpa [#allocation4], 0
    %s14 = scalar_lea.sflag [#allocation4], 1
    %15 = vsyncpa %s14, 0
    loop: start=0, step=1, limit=4
    $region2: #{tpu_custom_call.1} parent=1 // loop_pre_header
      _
    $region3: #{tpu_custom_call.1} parent=1 // loop_header
      %s17 = sphi 0, %s21
      %p18 = scmp.ge.s32.totalorder %s17, 4
      %s27 = sphi 0, %s29
      %s30 = sphi 0, %s27
      %s31 = sphi 0, %s30
      %s47 = sphi 0, %s31
      %s51 = sphi 0, %s51
      %s53 = sphi 0, %s51
      %s54 = sphi 0, %s53
      %s68 = sphi 0, %s54
      %s72 = sphi 0, %s72
      %s74 = sphi 0, %s72
      %s75 = sphi 0, %s74
      %s89 = sphi 0, %s75
      %s93 = sphi 0, %s93
      %s95 = sphi 0, %s93
      %s96 = sphi 0, %s95
      %s110 = sphi 0, %s96
      %s114 = sphi 0, %s114
      %s116 = sphi 0, %s114
      %s117 = sphi 0, %s116
      %s131 = sphi 0, %s117
      %s137 = sphi 0, %s139
      %s140 = sphi 0, %s137
      %s141 = sphi 0, %s140
      %s157 = sphi 0, %s141
    $region4: #{tpu_custom_call.1} parent=1 // loop_header_branch
      %20 = sbr.rel (%p18) target = $region8
    $region5: #{tpu_custom_call.1} parent=1 // loop_body
      %s22 = ssub.s32 %s17, 1
      %s23 = ssub.s32 %s17, 2
      %s24 = sadd.s32 %s17, 1
      %s25 = ssub.s32 %s17, %s24
      %p26 = scmp.eq.s32.totalorder %s25, 0
      %s28 = sadd.s32 %s27, 1
      %s29 = scalar_select %p26, %s27, %s28
      %p32 = pneg %p26
      %p33 = scmp.eq.s32.totalorder %s17, 1
      %p34 = por %p32, %p33
      %p35 = scmp.ne.s32.totalorder %s27, %s30
      %p36 = scmp.eq.s32.totalorder %s17, 0
      %p37 = por %p35, %p36
      %p38 = scmp.ne.s32.totalorder %s27, %s30
      %p39 = scmp.eq.s32.totalorder %s22, 1
      %p40 = por %p38, %p39
      %p41 = scmp.ne.s32.totalorder %s30, %s31
      %p42 = scmp.eq.s32.totalorder %s22, 0
      %p43 = por %p41, %p42
      %p44 = scmp.ne.s32.totalorder %s30, %s31
      %p45 = scmp.eq.s32.totalorder %s23, 1
      %p46 = por %p44, %p45
      %p48 = scmp.ne.s32.totalorder %s31, %s47
      %p49 = scmp.eq.s32.totalorder %s23, 0
      %p50 = por %p48, %p49
      %s52 = sadd.s32 %s51, 1
      %p55 = scmp.eq.s32.totalorder %s17, 1
      %p56 = scmp.ne.s32.totalorder %s51, %s53
      %p57 = scmp.eq.s32.totalorder %s17, 0
      %p58 = por %p56, %p57
      %p59 = scmp.ne.s32.totalorder %s51, %s53
      %p60 = scmp.eq.s32.totalorder %s22, 1
      %p61 = por %p59, %p60
      %p62 = scmp.ne.s32.totalorder %s53, %s54
      %p63 = scmp.eq.s32.totalorder %s22, 0
      %p64 = por %p62, %p63
      %p65 = scmp.ne.s32.totalorder %s53, %s54
      %p66 = scmp.eq.s32.totalorder %s23, 1
      %p67 = por %p65, %p66
      %p69 = scmp.ne.s32.totalorder %s54, %s68
      %p70 = scmp.eq.s32.totalorder %s23, 0
      %p71 = por %p69, %p70
      %s73 = sadd.s32 %s72, 1
      %p76 = scmp.eq.s32.totalorder %s17, 1
      %p77 = scmp.ne.s32.totalorder %s72, %s74
      %p78 = scmp.eq.s32.totalorder %s17, 0
      %p79 = por %p77, %p78
      %p80 = scmp.ne.s32.totalorder %s72, %s74
      %p81 = scmp.eq.s32.totalorder %s22, 1
      %p82 = por %p80, %p81
      %p83 = scmp.ne.s32.totalorder %s74, %s75
      %p84 = scmp.eq.s32.totalorder %s22, 0
      %p85 = por %p83, %p84
      %p86 = scmp.ne.s32.totalorder %s74, %s75
      %p87 = scmp.eq.s32.totalorder %s23, 1
      %p88 = por %p86, %p87
      %p90 = scmp.ne.s32.totalorder %s75, %s89
      %p91 = scmp.eq.s32.totalorder %s23, 0
      %p92 = por %p90, %p91
      %s94 = sadd.s32 %s93, 1
      %p97 = scmp.eq.s32.totalorder %s17, 1
      %p98 = scmp.ne.s32.totalorder %s93, %s95
      %p99 = scmp.eq.s32.totalorder %s17, 0
      %p100 = por %p98, %p99
      %p101 = scmp.ne.s32.totalorder %s93, %s95
      %p102 = scmp.eq.s32.totalorder %s22, 1
      %p103 = por %p101, %p102
      %p104 = scmp.ne.s32.totalorder %s95, %s96
      %p105 = scmp.eq.s32.totalorder %s22, 0
      %p106 = por %p104, %p105
      %p107 = scmp.ne.s32.totalorder %s95, %s96
      %p108 = scmp.eq.s32.totalorder %s23, 1
      %p109 = por %p107, %p108
      %p111 = scmp.ne.s32.totalorder %s96, %s110
      %p112 = scmp.eq.s32.totalorder %s23, 0
      %p113 = por %p111, %p112
      %s115 = sadd.s32 %s114, 1
      %p118 = scmp.eq.s32.totalorder %s17, 1
      %p119 = scmp.ne.s32.totalorder %s114, %s116
      %p120 = scmp.eq.s32.totalorder %s17, 0
      %p121 = por %p119, %p120
      %p122 = scmp.ne.s32.totalorder %s114, %s116
      %p123 = scmp.eq.s32.totalorder %s22, 1
      %p124 = por %p122, %p123
      %p125 = scmp.ne.s32.totalorder %s116, %s117
      %p126 = scmp.eq.s32.totalorder %s22, 0
      %p127 = por %p125, %p126
      %p128 = scmp.ne.s32.totalorder %s116, %s117
      %p129 = scmp.eq.s32.totalorder %s23, 1
      %p130 = por %p128, %p129
      %p132 = scmp.ne.s32.totalorder %s117, %s131
      %p133 = scmp.eq.s32.totalorder %s23, 0
      %p134 = por %p132, %p133
      %s135 = ssub.s32 %s17, %s24
      %p136 = scmp.eq.s32.totalorder %s135, 0
      %s138 = sadd.s32 %s137, 1
      %s139 = scalar_select %p136, %s137, %s138
      %p142 = pneg %p136
      %p143 = scmp.eq.s32.totalorder %s17, 1
      %p144 = por %p142, %p143
      %p145 = scmp.ne.s32.totalorder %s137, %s140
      %p146 = scmp.eq.s32.totalorder %s17, 0
      %p147 = por %p145, %p146
      %p148 = scmp.ne.s32.totalorder %s137, %s140
      %p149 = scmp.eq.s32.totalorder %s22, 1
      %p150 = por %p148, %p149
      %p151 = scmp.ne.s32.totalorder %s140, %s141
      %p152 = scmp.eq.s32.totalorder %s22, 0
      %p153 = por %p151, %p152
      %p154 = scmp.ne.s32.totalorder %s140, %s141
      %p155 = scmp.eq.s32.totalorder %s23, 1
      %p156 = por %p154, %p155
      %p158 = scmp.ne.s32.totalorder %s141, %s157
      %p159 = scmp.eq.s32.totalorder %s23, 0
      %p160 = por %p158, %p159
      %p161 = scmp.le.s32.totalorder 1, %s17
      %p162 = scmp.lt.s32.totalorder %s17, 3
      %p163 = pnand %p161, %p162
      %p164 = pneg %p163
      // Predicated region
      $region9: #{tpu_custom_call.1} parent=5 // pred_check
        _
      $region10: #{tpu_custom_call.1} parent=5 // pred_check_branch
        %166 = sbr.rel (%p163) target = $region12
      $region11: #{tpu_custom_call.1} parent=5 // pred_region
        %s167 = ssub.s32 %s17, 1
        // Predicated region
        $region13: #{tpu_custom_call.1} parent=11 // pred_check
          %p168 = pneg %p64
        $region14: #{tpu_custom_call.1} parent=11 // pred_check_branch
          %170 = sbr.rel (%p168) target = $region16
        $region15: #{tpu_custom_call.1} parent=11 // pred_region
          _
        $region16: #{tpu_custom_call.1} parent=11 // pred_fallthru
          _
        // Predicated region
        $region17: #{tpu_custom_call.1} parent=11 // pred_check
          %p171 = pneg %p85
        $region18: #{tpu_custom_call.1} parent=11 // pred_check_branch
          %173 = sbr.rel (%p171) target = $region20
        $region19: #{tpu_custom_call.1} parent=11 // pred_region
          _
        $region20: #{tpu_custom_call.1} parent=11 // pred_fallthru
          _
        // Predicated region
        $region21: #{tpu_custom_call.1} parent=11 // pred_check
          %p174 = pneg %p106
        $region22: #{tpu_custom_call.1} parent=11 // pred_check_branch
          %176 = sbr.rel (%p174) target = $region24
        $region23: #{tpu_custom_call.1} parent=11 // pred_region
          _
        $region24: #{tpu_custom_call.1} parent=11 // pred_fallthru
          _
        // Predicated region
        $region25: #{tpu_custom_call.1} parent=11 // pred_check
          %p177 = pneg %p127
        $region26: #{tpu_custom_call.1} parent=11 // pred_check_branch
          %179 = sbr.rel (%p177) target = $region28
        $region27: #{tpu_custom_call.1} parent=11 // pred_region
          _
        $region28: #{tpu_custom_call.1} parent=11 // pred_fallthru
          _
      $region12: #{tpu_custom_call.1} parent=5 // pred_fallthru
        _
      %p180 = scmp.lt.s32.totalorder %s17, 2
      // Predicated region
      $region29: #{tpu_custom_call.1} parent=5 // pred_check
        %p181 = pneg %p180
      $region30: #{tpu_custom_call.1} parent=5 // pred_check_branch
        %183 = sbr.rel (%p181) target = $region32
      $region31: #{tpu_custom_call.1} parent=5 // pred_region
        // Predicated region
        $region33: #{tpu_custom_call.1} parent=31 // pred_check
          %p184 = pneg %p37
        $region34: #{tpu_custom_call.1} parent=31 // pred_check_branch
          %186 = sbr.rel (%p184) target = $region36
        $region35: #{tpu_custom_call.1} parent=31 // pred_region
          %s187 = sand.u32 %s27, 1
          %s188 = scalar_lea.sflag [#allocation3], %s187
          %s189 = sand.u32 %s27, 1
          %s190 = smul.addr %s189, 16
          %s191 = scalar_lea.vmem [#allocation2], %s190
          %193 = vsyncadd %s188, 0
          %s194 = smul.addr %s17, 2
          %s195 = smul.addr %s194, 8
          %s196 = scalar_lea.hbm %s0, %s195
          %s198 = sshll.u32 %s196, 4
          %s199 = int_to_ptr.hbm [resolvable:$true] %s198
          %s200 = sshll.u32 %s191, 4
          %s201 = int_to_ptr.vmem [resolvable:$true] %s200
          %203 = dma.hbm_to_vmem [thread:$0]  %s199, 256, %s201, %s188
        $region36: #{tpu_custom_call.1} parent=31 // pred_fallthru
          _
      $region32: #{tpu_custom_call.1} parent=5 // pred_fallthru
        _
      %p204 = scmp.le.s32.totalorder 1, %s17
      %p205 = scmp.lt.s32.totalorder %s17, 3
      %p206 = pnand %p204, %p205
      %p207 = pneg %p206
      // Predicated region
      $region37: #{tpu_custom_call.1} parent=5 // pred_check
        _
      $region38: #{tpu_custom_call.1} parent=5 // pred_check_branch
        %209 = sbr.rel (%p206) target = $region40
      $region39: #{tpu_custom_call.1} parent=5 // pred_region
        %s210 = ssub.s32 %s17, 1
        %s211 = sand.u32 %s30, 1
        %s212 = scalar_lea.sflag [#allocation3], %s211
        %s213 = sand.u32 %s30, 1
        %s214 = smul.addr %s213, 16
        %s215 = scalar_lea.vmem [#allocation2], %s214
        // Predicated region
        $region41: #{tpu_custom_call.1} parent=39 // pred_check
          %p216 = pneg %p43
        $region42: #{tpu_custom_call.1} parent=39 // pred_check_branch
          %218 = sbr.rel (%p216) target = $region44
        $region43: #{tpu_custom_call.1} parent=39 // pred_region
          %220 = dma.done %s212, 256
        $region44: #{tpu_custom_call.1} parent=39 // pred_fallthru
          _
        %s221 = sand.u32 %s30, 1
        %s222 = scalar_lea.sflag [#allocation3], %s221
        %s223 = sand.u32 %s30, 1
        %s224 = smul.addr %s223, 16
        %s225 = scalar_lea.vmem [#allocation2], %s224
        %p226 = pneg %p43
        %p227 = pneg %p40
        %p228 = pneg %p64
        %p229 = pneg %p61
        %p230 = pneg %p85
        %p231 = pneg %p82
        %p232 = pneg %p106
        %p233 = pneg %p103
        %p234 = pneg %p127
        %p235 = pneg %p124
        %p236 = pneg %p153
        %p237 = pneg %p150
        %s238 = sand.u32 %s140, 1
        %s239 = scalar_lea.sflag [#allocation4], %s238
        %s240 = sand.u32 %s140, 1
        %s241 = smul.addr %s240, 16
        %s242 = scalar_lea.vmem [#allocation5], %s241
        %v243 = vld [vmem:[%s215] sm:$0xff]
        %v244 = vld [vmem:[%s215 + $0x8] sm:$0xff]
        %v245 = vadd.f32 %v243, %v244
        %246 = vadd.xlane.f32.xlu0 %v245
        %v247 = vpop.xlane.xlu0 %246
        %v248 = vld [vmem:[%s1] sm:$0xff]
        %v249 = vld [vmem:[%s2] sm:$0x1]
        %v251 = vlaneseq
        %v252 = vand.u32 %v251, 127
        %v253 = vperm.slane %v247, %v252
        %vm254 = vcmask 64512
        %v255 = vsel %vm254, %v253, 0
        %257 = vmatpush.msra.mxu0 0.0
        %258 = vmatpush.msra.mxu0 0.0
        %259 = vmatpush.msra.mxu0 0.0
        %260 = vmatpush.msra.mxu0 0.0
        %261 = vmatpush.msra.mxu0 0.0
        %262 = vmatpush.msra.mxu0 0.0
        %263 = vmatpush.msra.mxu0 0.0
        %264 = vmatpush.msra.mxu0 0.0
        %265 = vmatpush.msra.mxu0 0.0
        %266 = vmatpush.msra.mxu0 0.0
        %267 = vmatpush.msra.mxu0 0.0
        %268 = vmatpush.msra.mxu0 0.0
        %269 = vmatpush.msra.mxu0 0.0
        %270 = vmatpush.msra.mxu0 0.0
        %271 = vmatpush.msra.mxu0 0.0
        %272 = vmatpush.msra.mxu0 %v248
        %273 = vmatmul.f32.gmra.mxu0 %v255
        %v274 = vpop.f32.mrf.mxu0
        %v275 = vadd.f32 %v249, %v274
        %276 = vdwg.mxu0
        %v277 = vmax.f32 %v275, 0.0
        %v278 = vld [vmem:[%s3] sm:$0x3]
        %v279 = vld [vmem:[%s4] sm:$0x1]
        %vm280 = vcmask 15360
        %v282 = vsel %vm280, %v277, 0
        %vm284 = vcmask 1041408
        %v286 = vsel %vm284, %v278, 0
        %288 = vmatpush.msra.mxu0 0.0
        %289 = vmatpush.msra.mxu0 0.0
        %290 = vmatpush.msra.mxu0 0.0
        %291 = vmatpush.msra.mxu0 0.0
        %292 = vmatpush.msra.mxu0 0.0
        %293 = vmatpush.msra.mxu0 0.0
        %294 = vmatpush.msra.mxu0 0.0
        %295 = vmatpush.msra.mxu0 0.0
        %296 = vmatpush.msra.mxu0 0.0
        %297 = vmatpush.msra.mxu0 0.0
        %298 = vmatpush.msra.mxu0 0.0
        %299 = vmatpush.msra.mxu0 0.0
        %300 = vmatpush.msra.mxu0 0.0
        %301 = vmatpush.msra.mxu0 0.0
        %302 = vmatpush.msra.mxu0 0.0
        %303 = vmatpush.msra.mxu0 %v286
        %304 = vmatmul.f32.gmra.mxu0 %v282
        %v305 = vpop.f32.mrf.mxu0
        %v306 = vadd.f32 %v279, %v305
        %307 = vdwg.mxu0
        %v308 = vadd.f32 %v306, 3.0
        %v309 = vmax.f32 %v308, 0.0
        %v310 = vmin.f32 %v309, 6.0
        %v311 = vmul.f32 %v310, 0.16666667
        %v312 = vperm.slane %v311, 0
        %v313 = vlaneseq
        %v314 = vshrl.u32 %v313, 7
        %316 = vset.pattern.permute.xlu0 %v314
        %317 = vperm.xlu0 %316, %v312
        %v318 = vpop.permute.xlu0 %317
        %v319 = vmul.f32 %v243, %v318
        %v320 = vmul.f32 %v244, %v318
        %321 = vst [vmem:[%s242] sm:$0xff] %v319
        %322 = vst [vmem:[%s242 + $0x8] sm:$0xff] %v320
        %s323 = sand.u32 %s140, 1
        %s324 = scalar_lea.sflag [#allocation4], %s323
        %s325 = sand.u32 %s140, 1
        %s326 = smul.addr %s325, 16
        %s327 = scalar_lea.vmem [#allocation5], %s326
        // Predicated region
        $region45: #{tpu_custom_call.1} parent=39 // pred_check
          %p328 = pneg %p150
        $region46: #{tpu_custom_call.1} parent=39 // pred_check_branch
          %330 = sbr.rel (%p328) target = $region48
        $region47: #{tpu_custom_call.1} parent=39 // pred_region
          %332 = vsyncadd %s324, 0
          %s333 = smul.addr %s22, 2
          %s334 = smul.addr %s333, 8
          %s335 = scalar_lea.hbm %s5, %s334
          %s337 = sshll.u32 %s327, 4
          %s338 = int_to_ptr.vmem [resolvable:$true] %s337
          %s339 = sshll.u32 %s335, 4
          %s340 = int_to_ptr.hbm [resolvable:$true] %s339
          %342 = dma.vmem_to_hbm [thread:$0]  %s338, 256, %s340, %s324
        $region48: #{tpu_custom_call.1} parent=39 // pred_fallthru
          _
      $region40: #{tpu_custom_call.1} parent=5 // pred_fallthru
        _
      %p343 = scmp.le.s32.totalorder 2, %s17
      // Predicated region
      $region49: #{tpu_custom_call.1} parent=5 // pred_check
        %p344 = pneg %p343
      $region50: #{tpu_custom_call.1} parent=5 // pred_check_branch
        %346 = sbr.rel (%p344) target = $region52
      $region51: #{tpu_custom_call.1} parent=5 // pred_region
        %s347 = ssub.s32 %s17, 2
        // Predicated region
        $region53: #{tpu_custom_call.1} parent=51 // pred_check
          %p348 = pneg %p156
        $region54: #{tpu_custom_call.1} parent=51 // pred_check_branch
          %350 = sbr.rel (%p348) target = $region56
        $region55: #{tpu_custom_call.1} parent=51 // pred_region
          %s351 = sand.u32 %s141, 1
          %s352 = scalar_lea.sflag [#allocation4], %s351
          %s353 = sand.u32 %s141, 1
          %s354 = smul.addr %s353, 16
          %s355 = scalar_lea.vmem [#allocation5], %s354
          %357 = dma.done %s352, 256
        $region56: #{tpu_custom_call.1} parent=51 // pred_fallthru
          _
      $region52: #{tpu_custom_call.1} parent=5 // pred_fallthru
        _
    $region6: #{tpu_custom_call.1} parent=1 // loop_footer
      %s21 = sadd.s32 1, %s17
    $region7: #{tpu_custom_call.1} parent=1 // loop_footer_branch
      %16 = sbr.rel target = $region3
    $region8: #{tpu_custom_call.1} parent=1 // loop_exit
      _
    %358 = vsyncpa [#allocation3], 1
    %s359 = scalar_lea.sflag [#allocation3], 1
    %360 = vsyncpa %s359, 1
    %361 = vsyncpa [#allocation4], 1
    %s362 = scalar_lea.sflag [#allocation4], 1
    %363 = vsyncpa %s362, 1

</llo_original>
